<compile_context>
chip_gen: v6e
topology: v6e:2x2x1
jax: 0.10.0
libtpu: 0.0.40
codegen_flags: <defaults>
</compile_context>

<pallas_src>
from typing import NamedTuple

import jax
import jax.numpy as jnp
import numpy as np
from jax import lax
from jax.experimental import pallas as pl
from jax.experimental.pallas import tpu as pltpu


def _round_up(x: int, m: int) -> int:
    return ((x + m - 1) // m) * m


def _pad_contract(x: int) -> int:
    # Contraction dims feed the MXU K axis: 256-granular once past 128
    # (v6e/v7x MXU is 256 wide; 256 is also a multiple of v5e's 128 width).
    return _round_up(x, 128) if x <= 128 else _round_up(x, 256)


class PreparedEncoder(NamedTuple):
    """Per-image encoder state: padded, pre-transposed key and padded value."""
    key_t: jax.Array     # (Dp, Lp) compute_dtype, encoder_key.T zero-padded
    value: jax.Array     # (Lp, Ep) compute_dtype, encoder_value zero-padded
    seq_len: int         # L (true, unpadded)
    decoder_dim: int     # D
    encoder_dim: int     # E


def prepare_encoder(encoder_key, encoder_value, *, compute_dtype=jnp.float32):
    """Hoisted per-image prep: transpose + pad K/V once, reuse every decode step."""
    encoder_key = jnp.asarray(encoder_key)
    encoder_value = jnp.asarray(encoder_value)
    L, D = encoder_key.shape
    Lv, E = encoder_value.shape
    assert L == Lv, "encoder_key and encoder_value must share the L dimension"

    Dp = _pad_contract(D)          # contraction dim of the first matmul
    Lp = _pad_contract(L)          # lane dim of energy AND contraction of second matmul
    Ep = _round_up(E, 128)         # output-only dim

    key_t = jnp.pad(encoder_key.astype(compute_dtype).T,
                    ((0, Dp - D), (0, Lp - L)))
    value = jnp.pad(encoder_value.astype(compute_dtype),
                    ((0, Lp - L), (0, Ep - E)))
    return PreparedEncoder(key_t, value, L, D, E)


def _make_image_attention_kernel(l_actual: int, l_padded: int):
    """Kernel closure that knows the true (unpadded) L for softmax masking."""

    def kernel(hidden_ref, key_t_ref, value_ref, attended_ref, score_ref):
        hidden = hidden_ref[...]          # (TB, Dp) compute_dtype
        key_t = key_t_ref[...]            # (Dp, Lp) compute_dtype (pre-transposed)
        value = value_ref[...]            # (Lp, Ep) compute_dtype

        # energy[b, l] = sum_d hidden[b, d] * key[l, d] -> (TB, Lp), f32 accumulate.
        energy = jnp.dot(hidden, key_t, preferred_element_type=jnp.float32)

        # Mask padded L lanes so they contribute exactly 0 to the softmax.
        if l_padded != l_actual:
            lane = lax.broadcasted_iota(jnp.int32, energy.shape, 1)
            energy = jnp.where(lane < l_actual, energy, jnp.float32(-1e30))

        # softmax over L (PyTorch softmax(dim=1)), numerically stable, in f32.
        m = jnp.max(energy, axis=-1, keepdims=True)
        p = jnp.exp(energy - m)
        denom = jnp.sum(p, axis=-1, keepdims=True)
        score = p / denom                                  # (TB, Lp) f32

        # attended[b, e] = sum_l score[b, l] * value[l, e] -> (TB, Ep), f32 acc.
        attended = jnp.dot(score.astype(value.dtype), value,
                           preferred_element_type=jnp.float32)

        attended_ref[...] = attended.astype(attended_ref.dtype)
        score_ref[...] = score.astype(score_ref.dtype)

    return kernel


def image_attention_prepared(decoder_hidden, prep: PreparedEncoder, *,
                             max_batch_tile: int = 128):
    """Run attention for a (B, D) batch of decoder states against prepared K/V.

    B=1 matches the PyTorch module exactly; B>1 runs B independent queries
    (beams / timesteps) against the same encoder, amortizing launch + DMA.
    Returns (attended (B, 1, E) f32, score (B, L) f32).
    """
    decoder_hidden = jnp.asarray(decoder_hidden)
    B, D = decoder_hidden.shape
    assert D == prep.decoder_dim

    Dp, Lp = prep.key_t.shape
    _, Ep = prep.value.shape
    L, E = prep.seq_len, prep.encoder_dim
    compute_dtype = prep.key_t.dtype

    # Batch tile: multiple of 8 sublanes; when B > 8 make sure the grid has at
    # least 2 steps so the "parallel" axis shards across both v7x TensorCores.
    if B <= 8:
        TB = 8
    else:
        TB = min(max_batch_tile, _round_up(-(-B // 2), 8))
    Bp = _round_up(B, TB)
    grid = (Bp // TB,)

    hidden_p = jnp.pad(decoder_hidden.astype(compute_dtype),
                       ((0, Bp - B), (0, Dp - D)))

    # Explicit scoped-VMEM budget (v5e default is only 16 MiB; v7x physical 64 MiB).
    isz = jnp.dtype(compute_dtype).itemsize
    need = (2 * TB * Dp * isz                 # hidden tiles, double-buffered
            + (Dp * Lp + Lp * Ep) * isz       # resident K^T + V (single-buffered)
            + 2 * (TB * Ep + TB * Lp) * 4     # f32 output tiles, double-buffered
            + 4 * TB * Lp * 4)                # softmax intermediates headroom
    vmem_limit = int(min(max(2 * need, 32 * 1024 * 1024), 64 * 1024 * 1024))

    kernel = _make_image_attention_kernel(L, Lp)
    out_shape = (jax.ShapeDtypeStruct((Bp, Ep), jnp.float32),
                 jax.ShapeDtypeStruct((Bp, Lp), jnp.float32))
    cparams = pltpu.CompilerParams(dimension_semantics=("parallel",),
                                   vmem_limit_bytes=vmem_limit)

    def build(kv_pipeline_mode):
        kv_kw = {} if kv_pipeline_mode is None else dict(pipeline_mode=kv_pipeline_mode)
        return pl.pallas_call(
            kernel,
            out_shape=out_shape,
            grid=grid,
            in_specs=[
                pl.BlockSpec((TB, Dp), lambda b: (b, 0)),            # batch-tiled queries
                pl.BlockSpec((Dp, Lp), lambda b: (0, 0), **kv_kw),   # key^T, resident
                pl.BlockSpec((Lp, Ep), lambda b: (0, 0), **kv_kw),   # value, resident
            ],
            out_specs=(
                pl.BlockSpec((TB, Ep), lambda b: (b, 0)),
                pl.BlockSpec((TB, Lp), lambda b: (b, 0)),
            ),
            compiler_params=cparams,
        )

    buffered = getattr(pl, "Buffered", None)
    try:
        mode = buffered(1) if buffered is not None else None
        attended_p, score_p = build(mode)(hidden_p, prep.key_t, prep.value)
    except Exception:
        # Single-buffered constant K/V rejected by this build; identical semantics.
        attended_p, score_p = build(None)(hidden_p, prep.key_t, prep.value)

    attended = attended_p[:B, :E].reshape(B, 1, E)   # matches torch.bmm output shape
    score = score_p[:B, :L]
    return attended, score


def image_attention(decoder_hidden, encoder_key, encoder_value, *,
                    compute_dtype=jnp.float32, max_batch_tile: int = 128):
    """One-shot convenience path (faithful to the module call signature).

    For repeated decode steps over the same image, call prepare_encoder() once
    and image_attention_prepared() per step instead.
    """
    prep = prepare_encoder(encoder_key, encoder_value, compute_dtype=compute_dtype)
    return image_attention_prepared(decoder_hidden, prep,
                                    max_batch_tile=max_batch_tile)


def _reference(decoder_hidden, encoder_key, encoder_value):
    energy = decoder_hidden @ encoder_key.T                 # (B, L)
    score = jax.nn.softmax(energy, axis=1)                  # (B, L)
    attended = (score @ encoder_value)[:, None, :]          # (B, 1, E)
    return attended, score


if __name__ == "__main__":
    L, D, E = 8, 32, 32          # seq positions, decoder_dim, encoder_dim

    key0 = jax.random.PRNGKey(0)
    k_h, k_k, k_v, k_hb = jax.random.split(key0, 4)
    decoder_hidden = jax.random.normal(k_h, (1, D), dtype=jnp.float32)
    encoder_key = jax.random.normal(k_k, (L, D), dtype=jnp.float32)
    encoder_value = jax.random.normal(k_v, (L, E), dtype=jnp.float32)

    # Encoder prep hoisted: done once per image, reused across decode steps.
    prep = prepare_encoder(encoder_key, encoder_value)

    # Exact PyTorch-module case: single decoder state (bmm batch of 1).
    attended, score = image_attention_prepared(decoder_hidden, prep)
    jax.block_until_ready((attended, score))
    ref_attended, ref_score = _reference(decoder_hidden, encoder_key, encoder_value)
    np.testing.assert_allclose(np.asarray(score), np.asarray(ref_score),
                               rtol=1e-5, atol=1e-5)
    np.testing.assert_allclose(np.asarray(attended), np.asarray(ref_attended),
                               rtol=1e-5, atol=1e-5)

    # Second decode "step" reusing the same prepared encoder (hoisted-prep path).
    attended2, score2 = image_attention_prepared(decoder_hidden * 0.5, prep)
    jax.block_until_ready((attended2, score2))
    ref_attended2, ref_score2 = _reference(decoder_hidden * 0.5, encoder_key, encoder_value)
    np.testing.assert_allclose(np.asarray(score2), np.asarray(ref_score2),
                               rtol=1e-5, atol=1e-5)
    np.testing.assert_allclose(np.asarray(attended2), np.asarray(ref_attended2),
                               rtol=1e-5, atol=1e-5)

    # Batched variant: several decoder states / beams sharing the same K/V.
    # B=16 > 8 gives >= 2 grid steps so the parallel axis can shard across cores.
    hidden_batched = jax.random.normal(k_hb, (16, D), dtype=jnp.float32)
    attended_b, score_b = image_attention_prepared(hidden_batched, prep)
    jax.block_until_ready((attended_b, score_b))
    ref_attended_b, ref_score_b = _reference(hidden_batched, encoder_key, encoder_value)
    np.testing.assert_allclose(np.asarray(score_b), np.asarray(ref_score_b),
                               rtol=1e-5, atol=1e-5)
    np.testing.assert_allclose(np.asarray(attended_b), np.asarray(ref_attended_b),
                               rtol=1e-5, atol=1e-5)

    # bf16 MXU path (v6e/v7x native rate): smoke check with relaxed tolerances;
    # softmax and matmul accumulation remain f32 inside the kernel.
    attended_bf, score_bf = image_attention(hidden_batched, encoder_key, encoder_value,
                                            compute_dtype=jnp.bfloat16)
    jax.block_until_ready((attended_bf, score_bf))
    np.testing.assert_allclose(np.asarray(score_bf), np.asarray(ref_score_b),
                               rtol=1e-1, atol=1e-1)
    np.testing.assert_allclose(np.asarray(attended_bf), np.asarray(ref_attended_b),
                               rtol=1e-1, atol=1e-1)

    print("KERNEL_OK")
</pallas_src>

<mosaic_0001>
module attributes {stable_mosaic.version = 11 : i64} {
  func.func @kernel(%arg0: i32, %arg1: memref<8x128xf32, #tpu.memory_space<vmem>>, %arg2: memref<128x128xf32, #tpu.memory_space<vmem>>, %arg3: memref<128x128xf32, #tpu.memory_space<vmem>>, %arg4: memref<8x128xf32, #tpu.memory_space<vmem>>, %arg5: memref<8x128xf32, #tpu.memory_space<vmem>>) attributes {dimension_semantics = [#tpu.dimension_semantics<parallel>], iteration_bounds = array<i64: 1>, scalar_prefetch = 0 : i64, scratch_operands = 0 : i64, tpu.core_type = #tpu.core_type<tc>, window_params = [{transform_indices = @transform_0, window_bounds = array<i64: 8, 128>}, {pipeline_mode = #tpu.pipeline_mode<synchronous>, transform_indices = @transform_1, window_bounds = array<i64: 128, 128>}, {pipeline_mode = #tpu.pipeline_mode<synchronous>, transform_indices = @transform_2, window_bounds = array<i64: 128, 128>}, {transform_indices = @transform_3, window_bounds = array<i64: 8, 128>}, {transform_indices = @transform_4, window_bounds = array<i64: 8, 128>}]} {
    %c0 = arith.constant 0 : index
    %c0_0 = arith.constant 0 : index
    %0 = vector.load %arg1[%c0, %c0_0] : memref<8x128xf32, #tpu.memory_space<vmem>>, vector<8x128xf32>
    %c0_1 = arith.constant 0 : index
    %c0_2 = arith.constant 0 : index
    %1 = vector.load %arg2[%c0_1, %c0_2] : memref<128x128xf32, #tpu.memory_space<vmem>>, vector<128x128xf32>
    %c0_3 = arith.constant 0 : index
    %c0_4 = arith.constant 0 : index
    %2 = vector.load %arg3[%c0_3, %c0_4] : memref<128x128xf32, #tpu.memory_space<vmem>>, vector<128x128xf32>
    %cst = arith.constant dense<0.000000e+00> : vector<8x128xf32>
    %3 = tpu.matmul %0, %1, %cst {dimension_numbers = #tpu.dot_dimension_numbers<[1], [0], [0], [1], [0, 0, 1, 1], [], []>} : vector<8x128xf32>, vector<128x128xf32>, vector<8x128xf32> -> vector<8x128xf32>
    %4 = tpu.iota {dimensions = array<i32: 1>} : vector<8x128xi32>
    %c8_i32 = arith.constant 8 : i32
    %5 = vector.broadcast %c8_i32 : i32 to vector<8x128xi32>
    %6 = arith.cmpi slt, %4, %5 : vector<8x128xi32>
    %cst_5 = arith.constant -1.000000e+30 : f32
    %7 = vector.broadcast %cst_5 : f32 to vector<8x128xf32>
    %8 = arith.select %6, %3, %7 : vector<8x128xi1>, vector<8x128xf32>
    %cst_6 = arith.constant dense<0xFF800000> : vector<8xf32>
    %9 = vector.multi_reduction <maximumf>, %8, %cst_6 [1] : vector<8x128xf32> to vector<8xf32>
    %10 = vector.shape_cast %9 : vector<8xf32> to vector<8x1xf32>
    %11 = vector.broadcast %10 : vector<8x1xf32> to vector<8x128xf32>
    %12 = arith.subf %8, %11 : vector<8x128xf32>
    %13 = math.exp %12 : vector<8x128xf32>
    %cst_7 = arith.constant dense<0.000000e+00> : vector<8xf32>
    %14 = vector.multi_reduction <add>, %13, %cst_7 [1] : vector<8x128xf32> to vector<8xf32>
    %15 = vector.shape_cast %14 : vector<8xf32> to vector<8x1xf32>
    %16 = vector.broadcast %15 : vector<8x1xf32> to vector<8x128xf32>
    %17 = arith.divf %13, %16 : vector<8x128xf32>
    %cst_8 = arith.constant dense<0.000000e+00> : vector<8x128xf32>
    %18 = tpu.matmul %17, %2, %cst_8 {dimension_numbers = #tpu.dot_dimension_numbers<[1], [0], [0], [1], [0, 0, 1, 1], [], []>} : vector<8x128xf32>, vector<128x128xf32>, vector<8x128xf32> -> vector<8x128xf32>
    %c0_9 = arith.constant 0 : index
    %c0_10 = arith.constant 0 : index
    %19 = vector.load %arg4[%c0_9, %c0_10] : memref<8x128xf32, #tpu.memory_space<vmem>>, vector<8x128xf32>
    tpu.vector_store %arg4[%c0_9, %c0_10], %18 {strides = array<i32>} : memref<8x128xf32, #tpu.memory_space<vmem>>, vector<8x128xf32>,
    %c0_11 = arith.constant 0 : index
    %c0_12 = arith.constant 0 : index
    %20 = vector.load %arg5[%c0_11, %c0_12] : memref<8x128xf32, #tpu.memory_space<vmem>>, vector<8x128xf32>
    tpu.vector_store %arg5[%c0_11, %c0_12], %17 {strides = array<i32>} : memref<8x128xf32, #tpu.memory_space<vmem>>, vector<8x128xf32>,
    return
  }
  func.func @transform_0(%arg0: i32) -> (i32, i32) {
    %c0_i32 = arith.constant 0 : i32
    %c0_i32_0 = arith.constant 0 : i32
    return %arg0, %c0_i32 : i32, i32
  }
  func.func @transform_1(%arg0: i32) -> (i32, i32) {
    %c0_i32 = arith.constant 0 : i32
    %c0_i32_0 = arith.constant 0 : i32
    %c0_i32_1 = arith.constant 0 : i32
    return %c0_i32, %c0_i32_0 : i32, i32
  }
  func.func @transform_2(%arg0: i32) -> (i32, i32) {
    %c0_i32 = arith.constant 0 : i32
    %c0_i32_0 = arith.constant 0 : i32
    %c0_i32_1 = arith.constant 0 : i32
    return %c0_i32, %c0_i32_0 : i32, i32
  }
  func.func @transform_3(%arg0: i32) -> (i32, i32) {
    %c0_i32 = arith.constant 0 : i32
    %c0_i32_0 = arith.constant 0 : i32
    return %arg0, %c0_i32 : i32, i32
  }
  func.func @transform_4(%arg0: i32) -> (i32, i32) {
    %c0_i32 = arith.constant 0 : i32
    %c0_i32_0 = arith.constant 0 : i32
    return %arg0, %c0_i32 : i32, i32
  }
}

module attributes {stable_mosaic.version = 11 : i64} {
  func.func @kernel(%arg0: i32, %arg1: memref<8x128xf32, #tpu.memory_space<vmem>>, %arg2: memref<128x128xf32, #tpu.memory_space<vmem>>, %arg3: memref<128x128xf32, #tpu.memory_space<vmem>>, %arg4: memref<8x128xf32, #tpu.memory_space<vmem>>, %arg5: memref<8x128xf32, #tpu.memory_space<vmem>>) attributes {dimension_semantics = [#tpu.dimension_semantics<parallel>], iteration_bounds = array<i64: 1>, scalar_prefetch = 0 : i64, scratch_operands = 0 : i64, tpu.core_type = #tpu.core_type<tc>, window_params = [{transform_indices = @transform_0, window_bounds = array<i64: 8, 128>}, {pipeline_mode = #tpu.pipeline_mode<synchronous>, transform_indices = @transform_1, window_bounds = array<i64: 128, 128>}, {pipeline_mode = #tpu.pipeline_mode<synchronous>, transform_indices = @transform_2, window_bounds = array<i64: 128, 128>}, {transform_indices = @transform_3, window_bounds = array<i64: 8, 128>}, {transform_indices = @transform_4, window_bounds = array<i64: 8, 128>}]} {
    %c0 = arith.constant 0 : index
    %c0_0 = arith.constant 0 : index
    %0 = vector.load %arg1[%c0, %c0_0] : memref<8x128xf32, #tpu.memory_space<vmem>>, vector<8x128xf32>
    %c0_1 = arith.constant 0 : index
    %c0_2 = arith.constant 0 : index
    %1 = vector.load %arg2[%c0_1, %c0_2] : memref<128x128xf32, #tpu.memory_space<vmem>>, vector<128x128xf32>
    %c0_3 = arith.constant 0 : index
    %c0_4 = arith.constant 0 : index
    %2 = vector.load %arg3[%c0_3, %c0_4] : memref<128x128xf32, #tpu.memory_space<vmem>>, vector<128x128xf32>
    %cst = arith.constant dense<0.000000e+00> : vector<8x128xf32>
    %3 = tpu.matmul %0, %1, %cst {dimension_numbers = #tpu.dot_dimension_numbers<[1], [0], [0], [1], [0, 0, 1, 1], [], []>} : vector<8x128xf32>, vector<128x128xf32>, vector<8x128xf32> -> vector<8x128xf32>
    %4 = tpu.iota {dimensions = array<i32: 1>} : vector<8x128xi32>
    %c8_i32 = arith.constant 8 : i32
    %5 = vector.broadcast %c8_i32 : i32 to vector<8x128xi32>
    %6 = arith.cmpi slt, %4, %5 : vector<8x128xi32>
    %cst_5 = arith.constant -1.000000e+30 : f32
    %7 = vector.broadcast %cst_5 : f32 to vector<8x128xf32>
    %8 = arith.select %6, %3, %7 : vector<8x128xi1>, vector<8x128xf32>
    %cst_6 = arith.constant dense<0xFF800000> : vector<8xf32>
    %9 = vector.multi_reduction <maximumf>, %8, %cst_6 [1] : vector<8x128xf32> to vector<8xf32>
    %10 = vector.shape_cast %9 : vector<8xf32> to vector<8x1xf32>
    %11 = vector.broadcast %10 : vector<8x1xf32> to vector<8x128xf32>
    %12 = arith.subf %8, %11 : vector<8x128xf32>
    %13 = math.exp %12 : vector<8x128xf32>
    %cst_7 = arith.constant dense<0.000000e+00> : vector<8xf32>
    %14 = vector.multi_reduction <add>, %13, %cst_7 [1] : vector<8x128xf32> to vector<8xf32>
    %15 = vector.shape_cast %14 : vector<8xf32> to vector<8x1xf32>
    %16 = vector.broadcast %15 : vector<8x1xf32> to vector<8x128xf32>
    %17 = arith.divf %13, %16 : vector<8x128xf32>
    %cst_8 = arith.constant dense<0.000000e+00> : vector<8x128xf32>
    %18 = tpu.matmul %17, %2, %cst_8 {dimension_numbers = #tpu.dot_dimension_numbers<[1], [0], [0], [1], [0, 0, 1, 1], [], []>} : vector<8x128xf32>, vector<128x128xf32>, vector<8x128xf32> -> vector<8x128xf32>
    %c0_9 = arith.constant 0 : index
    %c0_10 = arith.constant 0 : index
    %19 = vector.load %arg4[%c0_9, %c0_10] : memref<8x128xf32, #tpu.memory_space<vmem>>, vector<8x128xf32>
    tpu.vector_store %arg4[%c0_9, %c0_10], %18 {strides = array<i32>} : memref<8x128xf32, #tpu.memory_space<vmem>>, vector<8x128xf32>,
    %c0_11 = arith.constant 0 : index
    %c0_12 = arith.constant 0 : index
    %20 = vector.load %arg5[%c0_11, %c0_12] : memref<8x128xf32, #tpu.memory_space<vmem>>, vector<8x128xf32>
    tpu.vector_store %arg5[%c0_11, %c0_12], %17 {strides = array<i32>} : memref<8x128xf32, #tpu.memory_space<vmem>>, vector<8x128xf32>,
    return
  }
  func.func @transform_0(%arg0: i32) -> (i32, i32) {
    %c0_i32 = arith.constant 0 : i32
    %c0_i32_0 = arith.constant 0 : i32
    return %arg0, %c0_i32 : i32, i32
  }
  func.func @transform_1(%arg0: i32) -> (i32, i32) {
    %c0_i32 = arith.constant 0 : i32
    %c0_i32_0 = arith.constant 0 : i32
    %c0_i32_1 = arith.constant 0 : i32
    return %c0_i32, %c0_i32_0 : i32, i32
  }
  func.func @transform_2(%arg0: i32) -> (i32, i32) {
    %c0_i32 = arith.constant 0 : i32
    %c0_i32_0 = arith.constant 0 : i32
    %c0_i32_1 = arith.constant 0 : i32
    return %c0_i32, %c0_i32_0 : i32, i32
  }
  func.func @transform_3(%arg0: i32) -> (i32, i32) {
    %c0_i32 = arith.constant 0 : i32
    %c0_i32_0 = arith.constant 0 : i32
    return %arg0, %c0_i32 : i32, i32
  }
  func.func @transform_4(%arg0: i32) -> (i32, i32) {
    %c0_i32 = arith.constant 0 : i32
    %c0_i32_0 = arith.constant 0 : i32
    return %arg0, %c0_i32 : i32, i32
  }
}

</mosaic_0001>

<llo_original>
// kernel: tpu_custom_call.1
$region0: #{tpu_custom_call.1}
  #allocation0 [shape = 'u32[]', space=smem, size = 0x4, offset = 0x4, fixed_abs, tag = 'smem constant byte address 0x4 - core index']
  #allocation1 [shape = 'u32[144,128]{1,0:T(1,128)}', space=vmem, size = 0x12000, scoped, tag = 'internal scratch']
  %s0 = inlined_call_operand.hbm [shape: f32[8,128], index: 0, kind: input, shape index: {}]
  %s1 = inlined_call_operand.hbm [shape: f32[128,128], index: 1, kind: input, shape index: {}]
  %s2 = inlined_call_operand.hbm [shape: f32[128,128], index: 2, kind: input, shape index: {}]
  %s3 = inlined_call_operand.hbm [shape: f32[8,128], index: 3, kind: output, shape index: {0}]
  %s4 = inlined_call_operand.hbm [shape: f32[8,128], index: 4, kind: output, shape index: {1}]
  %5 = xla_tuple %s3, %s4
  %s6 = sld [smem:[#allocation0]]
  $region42: #{tpu_custom_call.1} parent=0
    _
  %s8 = ssub.s32 1, %s6
  %s9 = scalar_select 0, %s8, %s6
  $region1: #{tpu_custom_call.1} parent=0
    #allocation2 [shape = 'u8[4096]{0}', space=vmem, size = 0x1000, scoped, tag = 'input window, operand 0, single buffered']
    #allocation3 [shape = 's32[1]{0}', space=sflag, size = 0x4, scoped, tag = 'scoped memory for tpu_custom_call.1']
    #allocation4 [shape = 's32[1]{0}', space=sflag, size = 0x4, scoped, tag = 'scoped memory for tpu_custom_call.1']
    #allocation5 [shape = 'u8[65536]{0}', space=vmem, size = 0x10000, scoped, tag = 'input window, operand 1, single buffered']
    #allocation6 [shape = 's32[1]{0}', space=sflag, size = 0x4, scoped, tag = 'scoped memory for tpu_custom_call.1']
    #allocation7 [shape = 'u8[65536]{0}', space=vmem, size = 0x10000, scoped, tag = 'input window, operand 2, single buffered']
    #allocation8 [shape = 'u8[4096]{0}', space=vmem, size = 0x1000, scoped, tag = 'output window, operand 0, single buffered']
    #allocation9 [shape = 'u8[4096]{0}', space=vmem, size = 0x1000, scoped, tag = 'output window, operand 1, single buffered']
    #allocation10 [shape = 's32[1]{0}', space=sflag, size = 0x4, scoped, tag = 'scoped memory for tpu_custom_call.1']
    %10 = vsyncpa [#allocation3], 0
    %11 = vsyncpa [#allocation6], 0
    %12 = vsyncpa [#allocation4], 0
    %13 = vsyncpa [#allocation10], 0
    // Predicated region
    $region2: #{tpu_custom_call.1} parent=1 // pred_check
      _
    $region3: #{tpu_custom_call.1} parent=1 // pred_check_branch
      %15 = sbr.rel (0) target = $region5
    $region4: #{tpu_custom_call.1} parent=1 // pred_region
      %s17 = ssub.s32 128, 128
      %18 = vsyncadd [#allocation3], %s17
      %s20 = sshll.u32 [#allocation2], 4
      %s21 = int_to_ptr.vmem [resolvable:$true] %s20
      %23 = dma.hbm_to_vmem [thread:$0]  %s0, 128, %s21, [#allocation3]
    $region5: #{tpu_custom_call.1} parent=1 // pred_fallthru
      _
    // Predicated region
    $region6: #{tpu_custom_call.1} parent=1 // pred_check
      _
    $region7: #{tpu_custom_call.1} parent=1 // pred_check_branch
      %25 = sbr.rel (0) target = $region9
    $region8: #{tpu_custom_call.1} parent=1 // pred_region
      %s27 = ssub.s32 2048, 2048
      %28 = vsyncadd [#allocation6], %s27
      %s29 = sshll.u32 [#allocation5], 4
      %s30 = int_to_ptr.vmem [resolvable:$true] %s29
      %35 = dma.hbm_to_vmem [thread:$0]  %s1, 2048, %s30, [#allocation6], 128, 128, 8
    $region9: #{tpu_custom_call.1} parent=1 // pred_fallthru
      _
    // Predicated region
    $region10: #{tpu_custom_call.1} parent=1 // pred_check
      _
    $region11: #{tpu_custom_call.1} parent=1 // pred_check_branch
      %37 = sbr.rel (0) target = $region13
    $region12: #{tpu_custom_call.1} parent=1 // pred_region
      %s39 = ssub.s32 2048, 2048
      %40 = vsyncadd [#allocation6], %s39
      %s41 = sshll.u32 [#allocation7], 4
      %s42 = int_to_ptr.vmem [resolvable:$true] %s41
      %47 = dma.hbm_to_vmem [thread:$0]  %s2, 2048, %s42, [#allocation6], 128, 128, 8
    $region13: #{tpu_custom_call.1} parent=1 // pred_fallthru
      _
    // Predicated region
    $region14: #{tpu_custom_call.1} parent=1 // pred_check
      _
    $region15: #{tpu_custom_call.1} parent=1 // pred_check_branch
      %49 = sbr.rel (0) target = $region17
    $region16: #{tpu_custom_call.1} parent=1 // pred_region
      %50 = dma.done [#allocation3], 128
    $region17: #{tpu_custom_call.1} parent=1 // pred_fallthru
      _
    // Predicated region
    $region18: #{tpu_custom_call.1} parent=1 // pred_check
      _
    $region19: #{tpu_custom_call.1} parent=1 // pred_check_branch
      %52 = sbr.rel (0) target = $region21
    $region20: #{tpu_custom_call.1} parent=1 // pred_region
      %53 = dma.done [#allocation6], 2048
    $region21: #{tpu_custom_call.1} parent=1 // pred_fallthru
      _
    // Predicated region
    $region22: #{tpu_custom_call.1} parent=1 // pred_check
      _
    $region23: #{tpu_custom_call.1} parent=1 // pred_check_branch
      %55 = sbr.rel (0) target = $region25
    $region24: #{tpu_custom_call.1} parent=1 // pred_region
      %56 = dma.done [#allocation6], 2048
    $region25: #{tpu_custom_call.1} parent=1 // pred_fallthru
      _
    %v57 = vld [vmem:[#allocation2] sm:$0xff]
    %v58 = vld [vmem:[#allocation5] sm:$0xff]
    %v59 = vld [vmem:[#allocation5 + $0x8] sm:$0xff]
    %v60 = vld [vmem:[#allocation5 + $0x10] sm:$0xff]
    %v61 = vld [vmem:[#allocation5 + $0x18] sm:$0xff]
    %v62 = vld [vmem:[#allocation5 + $0x20] sm:$0xff]
    %v63 = vld [vmem:[#allocation5 + $0x28] sm:$0xff]
    %v64 = vld [vmem:[#allocation5 + $0x30] sm:$0xff]
    %v65 = vld [vmem:[#allocation5 + $0x38] sm:$0xff]
    %v66 = vld [vmem:[#allocation5 + $0x40] sm:$0xff]
    %v67 = vld [vmem:[#allocation5 + $0x48] sm:$0xff]
    %v68 = vld [vmem:[#allocation5 + $0x50] sm:$0xff]
    %v69 = vld [vmem:[#allocation5 + $0x58] sm:$0xff]
    %v70 = vld [vmem:[#allocation5 + $0x60] sm:$0xff]
    %v71 = vld [vmem:[#allocation5 + $0x68] sm:$0xff]
    %v72 = vld [vmem:[#allocation5 + $0x70] sm:$0xff]
    %v73 = vld [vmem:[#allocation5 + $0x78] sm:$0xff]
    %v74 = vld [vmem:[#allocation7] sm:$0xff]
    %v75 = vld [vmem:[#allocation7 + $0x8] sm:$0xff]
    %v76 = vld [vmem:[#allocation7 + $0x10] sm:$0xff]
    %v77 = vld [vmem:[#allocation7 + $0x18] sm:$0xff]
    %v78 = vld [vmem:[#allocation7 + $0x20] sm:$0xff]
    %v79 = vld [vmem:[#allocation7 + $0x28] sm:$0xff]
    %v80 = vld [vmem:[#allocation7 + $0x30] sm:$0xff]
    %v81 = vld [vmem:[#allocation7 + $0x38] sm:$0xff]
    %v82 = vld [vmem:[#allocation7 + $0x40] sm:$0xff]
    %v83 = vld [vmem:[#allocation7 + $0x48] sm:$0xff]
    %v84 = vld [vmem:[#allocation7 + $0x50] sm:$0xff]
    %v85 = vld [vmem:[#allocation7 + $0x58] sm:$0xff]
    %v86 = vld [vmem:[#allocation7 + $0x60] sm:$0xff]
    %v87 = vld [vmem:[#allocation7 + $0x68] sm:$0xff]
    %v88 = vld [vmem:[#allocation7 + $0x70] sm:$0xff]
    %v89 = vld [vmem:[#allocation7 + $0x78] sm:$0xff]
    %90 = vmatprep.subr.mxu0 0.0
    %91 = vmatpush1.msra.mxu0 %v73
    %92 = vmatprep.subr.mxu0 0.0
    %93 = vmatpush1.msra.mxu0 %v72
    %94 = vmatprep.subr.mxu0 0.0
    %95 = vmatpush1.msra.mxu0 %v71
    %96 = vmatprep.subr.mxu0 0.0
    %97 = vmatpush1.msra.mxu0 %v70
    %98 = vmatprep.subr.mxu0 0.0
    %99 = vmatpush1.msra.mxu0 %v69
    %100 = vmatprep.subr.mxu0 0.0
    %101 = vmatpush1.msra.mxu0 %v68
    %102 = vmatprep.subr.mxu0 0.0
    %103 = vmatpush1.msra.mxu0 %v67
    %104 = vmatprep.subr.mxu0 0.0
    %105 = vmatpush1.msra.mxu0 %v66
    %106 = vmatprep.subr.mxu0 0.0
    %107 = vmatpush1.msra.mxu0 %v65
    %108 = vmatprep.subr.mxu0 0.0
    %109 = vmatpush1.msra.mxu0 %v64
    %110 = vmatprep.subr.mxu0 0.0
    %111 = vmatpush1.msra.mxu0 %v63
    %112 = vmatprep.subr.mxu0 0.0
    %113 = vmatpush1.msra.mxu0 %v62
    %114 = vmatprep.subr.mxu0 0.0
    %115 = vmatpush1.msra.mxu0 %v61
    %116 = vmatprep.subr.mxu0 0.0
    %117 = vmatpush1.msra.mxu0 %v60
    %118 = vmatprep.subr.mxu0 0.0
    %119 = vmatpush1.msra.mxu0 %v59
    %120 = vmatprep.subr.mxu0 0.0
    %121 = vmatpush1.msra.mxu0 %v58
    %122 = vmatprep.subr.mxu0 0.0
    %123 = vmatpush2.msra.mxu0 0.0
    %124 = vmatprep.subr.mxu0 0.0
    %125 = vmatpush2.msra.mxu0 0.0
    %126 = vmatprep.subr.mxu0 0.0
    %127 = vmatpush2.msra.mxu0 0.0
    %128 = vmatprep.subr.mxu0 0.0
    %129 = vmatpush2.msra.mxu0 0.0
    %130 = vmatprep.subr.mxu0 0.0
    %131 = vmatpush2.msra.mxu0 0.0
    %132 = vmatprep.subr.mxu0 0.0
    %133 = vmatpush2.msra.mxu0 0.0
    %134 = vmatprep.subr.mxu0 0.0
    %135 = vmatpush2.msra.mxu0 0.0
    %136 = vmatprep.subr.mxu0 0.0
    %137 = vmatpush2.msra.mxu0 0.0
    %138 = vmatprep.subr.mxu0 0.0
    %139 = vmatpush2.msra.mxu0 0.0
    %140 = vmatprep.subr.mxu0 0.0
    %141 = vmatpush2.msra.mxu0 0.0
    %142 = vmatprep.subr.mxu0 0.0
    %143 = vmatpush2.msra.mxu0 0.0
    %144 = vmatprep.subr.mxu0 0.0
    %145 = vmatpush2.msra.mxu0 0.0
    %146 = vmatprep.subr.mxu0 0.0
    %147 = vmatpush2.msra.mxu0 0.0
    %148 = vmatprep.subr.mxu0 0.0
    %149 = vmatpush2.msra.mxu0 0.0
    %150 = vmatprep.subr.mxu0 0.0
    %151 = vmatpush2.msra.mxu0 0.0
    %152 = vmatprep.subr.mxu0 0.0
    %153 = vmatpush2.msra.mxu0 0.0
    %154 = vmatprep.mubr.f32.mxu0 0.0
    %155 = vmatmul.mubr.f32.gmra.mxu0 %v57
    %v156 = vpop.f32.mrf.mxu0
    %v157 = vadd.f32 0.0, %v156
    %v158 = vpop.f32.mrf.mxu0
    %159 = vdwg.mxu0
    %v160 = vlaneseq
    %v161 = vand.u32 %v160, 127
    %vm162 = vcmp.lt.s32.totalorder %v161, 8
    %v163 = vsel %vm162, %v157, -1e+30
    %164 = vmax.xlane.f32.xlu0 %v163
    %v165 = vpop.xlane.xlu0 %164
    %v166 = vsub.f32 %v163, %v165
    %v167 = vmul.f32 %v166, 1.442695
    %v168 = vpow.pop %v167
    %169 = vadd.xlane.f32.xlu0 %v168
    %v170 = vpop.xlane.xlu0 %169
    %v171 = vrcp.pop %v170
    %v172 = vmul.f32 %v168, %v171
    %173 = vmatprep.subr.mxu0 0.0
    %174 = vmatpush1.msra.mxu0 %v89
    %175 = vmatprep.subr.mxu0 0.0
    %176 = vmatpush1.msra.mxu0 %v88
    %177 = vmatprep.subr.mxu0 0.0
    %178 = vmatpush1.msra.mxu0 %v87
    %179 = vmatprep.subr.mxu0 0.0
    %180 = vmatpush1.msra.mxu0 %v86
    %181 = vmatprep.subr.mxu0 0.0
    %182 = vmatpush1.msra.mxu0 %v85
    %183 = vmatprep.subr.mxu0 0.0
    %184 = vmatpush1.msra.mxu0 %v84
    %185 = vmatprep.subr.mxu0 0.0
    %186 = vmatpush1.msra.mxu0 %v83
    %187 = vmatprep.subr.mxu0 0.0
    %188 = vmatpush1.msra.mxu0 %v82
    %189 = vmatprep.subr.mxu0 0.0
    %190 = vmatpush1.msra.mxu0 %v81
    %191 = vmatprep.subr.mxu0 0.0
    %192 = vmatpush1.msra.mxu0 %v80
    %193 = vmatprep.subr.mxu0 0.0
    %194 = vmatpush1.msra.mxu0 %v79
    %195 = vmatprep.subr.mxu0 0.0
    %196 = vmatpush1.msra.mxu0 %v78
    %197 = vmatprep.subr.mxu0 0.0
    %198 = vmatpush1.msra.mxu0 %v77
    %199 = vmatprep.subr.mxu0 0.0
    %200 = vmatpush1.msra.mxu0 %v76
    %201 = vmatprep.subr.mxu0 0.0
    %202 = vmatpush1.msra.mxu0 %v75
    %203 = vmatprep.subr.mxu0 0.0
    %204 = vmatpush1.msra.mxu0 %v74
    %205 = vmatprep.subr.mxu0 0.0
    %206 = vmatpush2.msra.mxu0 0.0
    %207 = vmatprep.subr.mxu0 0.0
    %208 = vmatpush2.msra.mxu0 0.0
    %209 = vmatprep.subr.mxu0 0.0
    %210 = vmatpush2.msra.mxu0 0.0
    %211 = vmatprep.subr.mxu0 0.0
    %212 = vmatpush2.msra.mxu0 0.0
    %213 = vmatprep.subr.mxu0 0.0
    %214 = vmatpush2.msra.mxu0 0.0
    %215 = vmatprep.subr.mxu0 0.0
    %216 = vmatpush2.msra.mxu0 0.0
    %217 = vmatprep.subr.mxu0 0.0
    %218 = vmatpush2.msra.mxu0 0.0
    %219 = vmatprep.subr.mxu0 0.0
    %220 = vmatpush2.msra.mxu0 0.0
    %221 = vmatprep.subr.mxu0 0.0
    %222 = vmatpush2.msra.mxu0 0.0
    %223 = vmatprep.subr.mxu0 0.0
    %224 = vmatpush2.msra.mxu0 0.0
    %225 = vmatprep.subr.mxu0 0.0
    %226 = vmatpush2.msra.mxu0 0.0
    %227 = vmatprep.subr.mxu0 0.0
    %228 = vmatpush2.msra.mxu0 0.0
    %229 = vmatprep.subr.mxu0 0.0
    %230 = vmatpush2.msra.mxu0 0.0
    %231 = vmatprep.subr.mxu0 0.0
    %232 = vmatpush2.msra.mxu0 0.0
    %233 = vmatprep.subr.mxu0 0.0
    %234 = vmatpush2.msra.mxu0 0.0
    %235 = vmatprep.subr.mxu0 0.0
    %236 = vmatpush2.msra.mxu0 0.0
    %237 = vmatprep.mubr.f32.mxu0 0.0
    %238 = vmatmul.mubr.f32.gmra.mxu0 %v172
    %v239 = vpop.f32.mrf.mxu0
    %v240 = vadd.f32 0.0, %v239
    %v241 = vpop.f32.mrf.mxu0
    %242 = vdwg.mxu0
    %243 = vst [vmem:[#allocation8] sm:$0xff] %v240
    %244 = vst [vmem:[#allocation9] sm:$0xff] %v172
    // Predicated region
    $region26: #{tpu_custom_call.1} parent=1 // pred_check
      _
    $region27: #{tpu_custom_call.1} parent=1 // pred_check_branch
      %246 = sbr.rel (0) target = $region29
    $region28: #{tpu_custom_call.1} parent=1 // pred_region
      %s248 = ssub.s32 128, 128
      %249 = vsyncadd [#allocation4], %s248
      %s251 = sshll.u32 [#allocation8], 4
      %s252 = int_to_ptr.vmem [resolvable:$true] %s251
      %254 = dma.vmem_to_hbm [thread:$0]  %s252, 128, %s3, [#allocation4]
    $region29: #{tpu_custom_call.1} parent=1 // pred_fallthru
      _
    // Predicated region
    $region30: #{tpu_custom_call.1} parent=1 // pred_check
      _
    $region31: #{tpu_custom_call.1} parent=1 // pred_check_branch
      %256 = sbr.rel (0) target = $region33
    $region32: #{tpu_custom_call.1} parent=1 // pred_region
      %s258 = ssub.s32 128, 128
      %259 = vsyncadd [#allocation10], %s258
      %s261 = sshll.u32 [#allocation9], 4
      %s262 = int_to_ptr.vmem [resolvable:$true] %s261
      %264 = dma.vmem_to_hbm [thread:$0]  %s262, 128, %s4, [#allocation10]
    $region33: #{tpu_custom_call.1} parent=1 // pred_fallthru
      _
    // Predicated region
    $region34: #{tpu_custom_call.1} parent=1 // pred_check
      _
    $region35: #{tpu_custom_call.1} parent=1 // pred_check_branch
      %266 = sbr.rel (0) target = $region37
    $region36: #{tpu_custom_call.1} parent=1 // pred_region
      %267 = dma.done [#allocation4], 128
    $region37: #{tpu_custom_call.1} parent=1 // pred_fallthru
      _
    // Predicated region
    $region38: #{tpu_custom_call.1} parent=1 // pred_check
      _
    $region39: #{tpu_custom_call.1} parent=1 // pred_check_branch
      %269 = sbr.rel (0) target = $region41
    $region40: #{tpu_custom_call.1} parent=1 // pred_region
      %270 = dma.done [#allocation10], 128
    $region41: #{tpu_custom_call.1} parent=1 // pred_fallthru
      _
    %271 = vsyncpa [#allocation3], 1
    %272 = vsyncpa [#allocation6], 1
    %273 = vsyncpa [#allocation4], 1
    %274 = vsyncpa [#allocation10], 1

// kernel: tpu_custom_call.1
$region0: #{tpu_custom_call.1}
  #allocation0 [shape = 'u32[]', space=smem, size = 0x4, offset = 0x4, fixed_abs, tag = 'smem constant byte address 0x4 - core index']
  #allocation1 [shape = 'u32[144,128]{1,0:T(1,128)}', space=vmem, size = 0x12000, scoped, tag = 'internal scratch']
  %s0 = inlined_call_operand.hbm [shape: f32[8,128], index: 0, kind: input, shape index: {}]
  %s1 = inlined_call_operand.hbm [shape: f32[128,128], index: 1, kind: input, shape index: {}]
  %s2 = inlined_call_operand.hbm [shape: f32[128,128], index: 2, kind: input, shape index: {}]
  %s3 = inlined_call_operand.hbm [shape: f32[8,128], index: 3, kind: output, shape index: {0}]
  %s4 = inlined_call_operand.hbm [shape: f32[8,128], index: 4, kind: output, shape index: {1}]
  %5 = xla_tuple %s3, %s4
  %s6 = sld [smem:[#allocation0]]
  $region42: #{tpu_custom_call.1} parent=0
    _
  %s8 = ssub.s32 1, %s6
  %s9 = scalar_select 0, %s8, %s6
  $region1: #{tpu_custom_call.1} parent=0
    #allocation2 [shape = 'u8[4096]{0}', space=vmem, size = 0x1000, scoped, tag = 'input window, operand 0, single buffered']
    #allocation3 [shape = 's32[1]{0}', space=sflag, size = 0x4, scoped, tag = 'scoped memory for tpu_custom_call.1']
    #allocation4 [shape = 's32[1]{0}', space=sflag, size = 0x4, scoped, tag = 'scoped memory for tpu_custom_call.1']
    #allocation5 [shape = 'u8[65536]{0}', space=vmem, size = 0x10000, scoped, tag = 'input window, operand 1, single buffered']
    #allocation6 [shape = 's32[1]{0}', space=sflag, size = 0x4, scoped, tag = 'scoped memory for tpu_custom_call.1']
    #allocation7 [shape = 'u8[65536]{0}', space=vmem, size = 0x10000, scoped, tag = 'input window, operand 2, single buffered']
    #allocation8 [shape = 'u8[4096]{0}', space=vmem, size = 0x1000, scoped, tag = 'output window, operand 0, single buffered']
    #allocation9 [shape = 'u8[4096]{0}', space=vmem, size = 0x1000, scoped, tag = 'output window, operand 1, single buffered']
    #allocation10 [shape = 's32[1]{0}', space=sflag, size = 0x4, scoped, tag = 'scoped memory for tpu_custom_call.1']
    %10 = vsyncpa [#allocation3], 0
    %11 = vsyncpa [#allocation6], 0
    %12 = vsyncpa [#allocation4], 0
    %13 = vsyncpa [#allocation10], 0
    // Predicated region
    $region2: #{tpu_custom_call.1} parent=1 // pred_check
      _
    $region3: #{tpu_custom_call.1} parent=1 // pred_check_branch
      %15 = sbr.rel (0) target = $region5
    $region4: #{tpu_custom_call.1} parent=1 // pred_region
      %s17 = ssub.s32 128, 128
      %18 = vsyncadd [#allocation3], %s17
      %s20 = sshll.u32 [#allocation2], 4
      %s21 = int_to_ptr.vmem [resolvable:$true] %s20
      %23 = dma.hbm_to_vmem [thread:$0]  %s0, 128, %s21, [#allocation3]
    $region5: #{tpu_custom_call.1} parent=1 // pred_fallthru
      _
    // Predicated region
    $region6: #{tpu_custom_call.1} parent=1 // pred_check
      _
    $region7: #{tpu_custom_call.1} parent=1 // pred_check_branch
      %25 = sbr.rel (0) target = $region9
    $region8: #{tpu_custom_call.1} parent=1 // pred_region
      %s27 = ssub.s32 2048, 2048
      %28 = vsyncadd [#allocation6], %s27
      %s29 = sshll.u32 [#allocation5], 4
      %s30 = int_to_ptr.vmem [resolvable:$true] %s29
      %35 = dma.hbm_to_vmem [thread:$0]  %s1, 2048, %s30, [#allocation6], 128, 128, 8
    $region9: #{tpu_custom_call.1} parent=1 // pred_fallthru
      _
    // Predicated region
    $region10: #{tpu_custom_call.1} parent=1 // pred_check
      _
    $region11: #{tpu_custom_call.1} parent=1 // pred_check_branch
      %37 = sbr.rel (0) target = $region13
    $region12: #{tpu_custom_call.1} parent=1 // pred_region
      %s39 = ssub.s32 2048, 2048
      %40 = vsyncadd [#allocation6], %s39
      %s41 = sshll.u32 [#allocation7], 4
      %s42 = int_to_ptr.vmem [resolvable:$true] %s41
      %47 = dma.hbm_to_vmem [thread:$0]  %s2, 2048, %s42, [#allocation6], 128, 128, 8
    $region13: #{tpu_custom_call.1} parent=1 // pred_fallthru
      _
    // Predicated region
    $region14: #{tpu_custom_call.1} parent=1 // pred_check
      _
    $region15: #{tpu_custom_call.1} parent=1 // pred_check_branch
      %49 = sbr.rel (0) target = $region17
    $region16: #{tpu_custom_call.1} parent=1 // pred_region
      %50 = dma.done [#allocation3], 128
    $region17: #{tpu_custom_call.1} parent=1 // pred_fallthru
      _
    // Predicated region
    $region18: #{tpu_custom_call.1} parent=1 // pred_check
      _
    $region19: #{tpu_custom_call.1} parent=1 // pred_check_branch
      %52 = sbr.rel (0) target = $region21
    $region20: #{tpu_custom_call.1} parent=1 // pred_region
      %53 = dma.done [#allocation6], 2048
    $region21: #{tpu_custom_call.1} parent=1 // pred_fallthru
      _
    // Predicated region
    $region22: #{tpu_custom_call.1} parent=1 // pred_check
      _
    $region23: #{tpu_custom_call.1} parent=1 // pred_check_branch
      %55 = sbr.rel (0) target = $region25
    $region24: #{tpu_custom_call.1} parent=1 // pred_region
      %56 = dma.done [#allocation6], 2048
    $region25: #{tpu_custom_call.1} parent=1 // pred_fallthru
      _
    %v57 = vld [vmem:[#allocation2] sm:$0xff]
    %v58 = vld [vmem:[#allocation5] sm:$0xff]
    %v59 = vld [vmem:[#allocation5 + $0x8] sm:$0xff]
    %v60 = vld [vmem:[#allocation5 + $0x10] sm:$0xff]
    %v61 = vld [vmem:[#allocation5 + $0x18] sm:$0xff]
    %v62 = vld [vmem:[#allocation5 + $0x20] sm:$0xff]
    %v63 = vld [vmem:[#allocation5 + $0x28] sm:$0xff]
    %v64 = vld [vmem:[#allocation5 + $0x30] sm:$0xff]
    %v65 = vld [vmem:[#allocation5 + $0x38] sm:$0xff]
    %v66 = vld [vmem:[#allocation5 + $0x40] sm:$0xff]
    %v67 = vld [vmem:[#allocation5 + $0x48] sm:$0xff]
    %v68 = vld [vmem:[#allocation5 + $0x50] sm:$0xff]
    %v69 = vld [vmem:[#allocation5 + $0x58] sm:$0xff]
    %v70 = vld [vmem:[#allocation5 + $0x60] sm:$0xff]
    %v71 = vld [vmem:[#allocation5 + $0x68] sm:$0xff]
    %v72 = vld [vmem:[#allocation5 + $0x70] sm:$0xff]
    %v73 = vld [vmem:[#allocation5 + $0x78] sm:$0xff]
    %v74 = vld [vmem:[#allocation7] sm:$0xff]
    %v75 = vld [vmem:[#allocation7 + $0x8] sm:$0xff]
    %v76 = vld [vmem:[#allocation7 + $0x10] sm:$0xff]
    %v77 = vld [vmem:[#allocation7 + $0x18] sm:$0xff]
    %v78 = vld [vmem:[#allocation7 + $0x20] sm:$0xff]
    %v79 = vld [vmem:[#allocation7 + $0x28] sm:$0xff]
    %v80 = vld [vmem:[#allocation7 + $0x30] sm:$0xff]
    %v81 = vld [vmem:[#allocation7 + $0x38] sm:$0xff]
    %v82 = vld [vmem:[#allocation7 + $0x40] sm:$0xff]
    %v83 = vld [vmem:[#allocation7 + $0x48] sm:$0xff]
    %v84 = vld [vmem:[#allocation7 + $0x50] sm:$0xff]
    %v85 = vld [vmem:[#allocation7 + $0x58] sm:$0xff]
    %v86 = vld [vmem:[#allocation7 + $0x60] sm:$0xff]
    %v87 = vld [vmem:[#allocation7 + $0x68] sm:$0xff]
    %v88 = vld [vmem:[#allocation7 + $0x70] sm:$0xff]
    %v89 = vld [vmem:[#allocation7 + $0x78] sm:$0xff]
    %90 = vmatprep.subr.mxu0 0.0
    %91 = vmatpush1.msra.mxu0 %v73
    %92 = vmatprep.subr.mxu0 0.0
    %93 = vmatpush1.msra.mxu0 %v72
    %94 = vmatprep.subr.mxu0 0.0
    %95 = vmatpush1.msra.mxu0 %v71
    %96 = vmatprep.subr.mxu0 0.0
    %97 = vmatpush1.msra.mxu0 %v70
    %98 = vmatprep.subr.mxu0 0.0
    %99 = vmatpush1.msra.mxu0 %v69
    %100 = vmatprep.subr.mxu0 0.0
    %101 = vmatpush1.msra.mxu0 %v68
    %102 = vmatprep.subr.mxu0 0.0
    %103 = vmatpush1.msra.mxu0 %v67
    %104 = vmatprep.subr.mxu0 0.0
    %105 = vmatpush1.msra.mxu0 %v66
    %106 = vmatprep.subr.mxu0 0.0
    %107 = vmatpush1.msra.mxu0 %v65
    %108 = vmatprep.subr.mxu0 0.0
    %109 = vmatpush1.msra.mxu0 %v64
    %110 = vmatprep.subr.mxu0 0.0
    %111 = vmatpush1.msra.mxu0 %v63
    %112 = vmatprep.subr.mxu0 0.0
    %113 = vmatpush1.msra.mxu0 %v62
    %114 = vmatprep.subr.mxu0 0.0
    %115 = vmatpush1.msra.mxu0 %v61
    %116 = vmatprep.subr.mxu0 0.0
    %117 = vmatpush1.msra.mxu0 %v60
    %118 = vmatprep.subr.mxu0 0.0
    %119 = vmatpush1.msra.mxu0 %v59
    %120 = vmatprep.subr.mxu0 0.0
    %121 = vmatpush1.msra.mxu0 %v58
    %122 = vmatprep.subr.mxu0 0.0
    %123 = vmatpush2.msra.mxu0 0.0
    %124 = vmatprep.subr.mxu0 0.0
    %125 = vmatpush2.msra.mxu0 0.0
    %126 = vmatprep.subr.mxu0 0.0
    %127 = vmatpush2.msra.mxu0 0.0
    %128 = vmatprep.subr.mxu0 0.0
    %129 = vmatpush2.msra.mxu0 0.0
    %130 = vmatprep.subr.mxu0 0.0
    %131 = vmatpush2.msra.mxu0 0.0
    %132 = vmatprep.subr.mxu0 0.0
    %133 = vmatpush2.msra.mxu0 0.0
    %134 = vmatprep.subr.mxu0 0.0
    %135 = vmatpush2.msra.mxu0 0.0
    %136 = vmatprep.subr.mxu0 0.0
    %137 = vmatpush2.msra.mxu0 0.0
    %138 = vmatprep.subr.mxu0 0.0
    %139 = vmatpush2.msra.mxu0 0.0
    %140 = vmatprep.subr.mxu0 0.0
    %141 = vmatpush2.msra.mxu0 0.0
    %142 = vmatprep.subr.mxu0 0.0
    %143 = vmatpush2.msra.mxu0 0.0
    %144 = vmatprep.subr.mxu0 0.0
    %145 = vmatpush2.msra.mxu0 0.0
    %146 = vmatprep.subr.mxu0 0.0
    %147 = vmatpush2.msra.mxu0 0.0
    %148 = vmatprep.subr.mxu0 0.0
    %149 = vmatpush2.msra.mxu0 0.0
    %150 = vmatprep.subr.mxu0 0.0
    %151 = vmatpush2.msra.mxu0 0.0
    %152 = vmatprep.subr.mxu0 0.0
    %153 = vmatpush2.msra.mxu0 0.0
    %154 = vmatprep.mubr.f32.mxu0 0.0
    %155 = vmatmul.mubr.f32.gmra.mxu0 %v57
    %v156 = vpop.f32.mrf.mxu0
    %v157 = vadd.f32 0.0, %v156
    %v158 = vpop.f32.mrf.mxu0
    %159 = vdwg.mxu0
    %v160 = vlaneseq
    %v161 = vand.u32 %v160, 127
    %vm162 = vcmp.lt.s32.totalorder %v161, 8
    %v163 = vsel %vm162, %v157, -1e+30
    %164 = vmax.xlane.f32.xlu0 %v163
    %v165 = vpop.xlane.xlu0 %164
    %v166 = vsub.f32 %v163, %v165
    %v167 = vmul.f32 %v166, 1.442695
    %v168 = vpow.pop %v167
    %169 = vadd.xlane.f32.xlu0 %v168
    %v170 = vpop.xlane.xlu0 %169
    %v171 = vrcp.pop %v170
    %v172 = vmul.f32 %v168, %v171
    %173 = vmatprep.subr.mxu0 0.0
    %174 = vmatpush1.msra.mxu0 %v89
    %175 = vmatprep.subr.mxu0 0.0
    %176 = vmatpush1.msra.mxu0 %v88
    %177 = vmatprep.subr.mxu0 0.0
    %178 = vmatpush1.msra.mxu0 %v87
    %179 = vmatprep.subr.mxu0 0.0
    %180 = vmatpush1.msra.mxu0 %v86
    %181 = vmatprep.subr.mxu0 0.0
    %182 = vmatpush1.msra.mxu0 %v85
    %183 = vmatprep.subr.mxu0 0.0
    %184 = vmatpush1.msra.mxu0 %v84
    %185 = vmatprep.subr.mxu0 0.0
    %186 = vmatpush1.msra.mxu0 %v83
    %187 = vmatprep.subr.mxu0 0.0
    %188 = vmatpush1.msra.mxu0 %v82
    %189 = vmatprep.subr.mxu0 0.0
    %190 = vmatpush1.msra.mxu0 %v81
    %191 = vmatprep.subr.mxu0 0.0
    %192 = vmatpush1.msra.mxu0 %v80
    %193 = vmatprep.subr.mxu0 0.0
    %194 = vmatpush1.msra.mxu0 %v79
    %195 = vmatprep.subr.mxu0 0.0
    %196 = vmatpush1.msra.mxu0 %v78
    %197 = vmatprep.subr.mxu0 0.0
    %198 = vmatpush1.msra.mxu0 %v77
    %199 = vmatprep.subr.mxu0 0.0
    %200 = vmatpush1.msra.mxu0 %v76
    %201 = vmatprep.subr.mxu0 0.0
    %202 = vmatpush1.msra.mxu0 %v75
    %203 = vmatprep.subr.mxu0 0.0
    %204 = vmatpush1.msra.mxu0 %v74
    %205 = vmatprep.subr.mxu0 0.0
    %206 = vmatpush2.msra.mxu0 0.0
    %207 = vmatprep.subr.mxu0 0.0
    %208 = vmatpush2.msra.mxu0 0.0
    %209 = vmatprep.subr.mxu0 0.0
    %210 = vmatpush2.msra.mxu0 0.0
    %211 = vmatprep.subr.mxu0 0.0
    %212 = vmatpush2.msra.mxu0 0.0
    %213 = vmatprep.subr.mxu0 0.0
    %214 = vmatpush2.msra.mxu0 0.0
    %215 = vmatprep.subr.mxu0 0.0
    %216 = vmatpush2.msra.mxu0 0.0
    %217 = vmatprep.subr.mxu0 0.0
    %218 = vmatpush2.msra.mxu0 0.0
    %219 = vmatprep.subr.mxu0 0.0
    %220 = vmatpush2.msra.mxu0 0.0
    %221 = vmatprep.subr.mxu0 0.0
    %222 = vmatpush2.msra.mxu0 0.0
    %223 = vmatprep.subr.mxu0 0.0
    %224 = vmatpush2.msra.mxu0 0.0
    %225 = vmatprep.subr.mxu0 0.0
    %226 = vmatpush2.msra.mxu0 0.0
    %227 = vmatprep.subr.mxu0 0.0
    %228 = vmatpush2.msra.mxu0 0.0
    %229 = vmatprep.subr.mxu0 0.0
    %230 = vmatpush2.msra.mxu0 0.0
    %231 = vmatprep.subr.mxu0 0.0
    %232 = vmatpush2.msra.mxu0 0.0
    %233 = vmatprep.subr.mxu0 0.0
    %234 = vmatpush2.msra.mxu0 0.0
    %235 = vmatprep.subr.mxu0 0.0
    %236 = vmatpush2.msra.mxu0 0.0
    %237 = vmatprep.mubr.f32.mxu0 0.0
    %238 = vmatmul.mubr.f32.gmra.mxu0 %v172
    %v239 = vpop.f32.mrf.mxu0
    %v240 = vadd.f32 0.0, %v239
    %v241 = vpop.f32.mrf.mxu0
    %242 = vdwg.mxu0
    %243 = vst [vmem:[#allocation8] sm:$0xff] %v240
    %244 = vst [vmem:[#allocation9] sm:$0xff] %v172
    // Predicated region
    $region26: #{tpu_custom_call.1} parent=1 // pred_check
      _
    $region27: #{tpu_custom_call.1} parent=1 // pred_check_branch
      %246 = sbr.rel (0) target = $region29
    $region28: #{tpu_custom_call.1} parent=1 // pred_region
      %s248 = ssub.s32 128, 128
      %249 = vsyncadd [#allocation4], %s248
      %s251 = sshll.u32 [#allocation8], 4
      %s252 = int_to_ptr.vmem [resolvable:$true] %s251
      %254 = dma.vmem_to_hbm [thread:$0]  %s252, 128, %s3, [#allocation4]
    $region29: #{tpu_custom_call.1} parent=1 // pred_fallthru
      _
    // Predicated region
    $region30: #{tpu_custom_call.1} parent=1 // pred_check
      _
    $region31: #{tpu_custom_call.1} parent=1 // pred_check_branch
      %256 = sbr.rel (0) target = $region33
    $region32: #{tpu_custom_call.1} parent=1 // pred_region
      %s258 = ssub.s32 128, 128
      %259 = vsyncadd [#allocation10], %s258
      %s261 = sshll.u32 [#allocation9], 4
      %s262 = int_to_ptr.vmem [resolvable:$true] %s261
      %264 = dma.vmem_to_hbm [thread:$0]  %s262, 128, %s4, [#allocation10]
    $region33: #{tpu_custom_call.1} parent=1 // pred_fallthru
      _
    // Predicated region
    $region34: #{tpu_custom_call.1} parent=1 // pred_check
      _
    $region35: #{tpu_custom_call.1} parent=1 // pred_check_branch
      %266 = sbr.rel (0) target = $region37
    $region36: #{tpu_custom_call.1} parent=1 // pred_region
      %267 = dma.done [#allocation4], 128
    $region37: #{tpu_custom_call.1} parent=1 // pred_fallthru
      _
    // Predicated region
    $region38: #{tpu_custom_call.1} parent=1 // pred_check
      _
    $region39: #{tpu_custom_call.1} parent=1 // pred_check_branch
      %269 = sbr.rel (0) target = $region41
    $region40: #{tpu_custom_call.1} parent=1 // pred_region
      %270 = dma.done [#allocation10], 128
    $region41: #{tpu_custom_call.1} parent=1 // pred_fallthru
      _
    %271 = vsyncpa [#allocation3], 1
    %272 = vsyncpa [#allocation6], 1
    %273 = vsyncpa [#allocation4], 1
    %274 = vsyncpa [#allocation10], 1

</llo_original>
